<compile_context>
chip_gen: v5e
topology: v5e:2x2
jax: 0.10.0
libtpu: 0.0.40
codegen_flags: <defaults>
</compile_context>

<pallas_src>
import functools

import jax
import jax.numpy as jnp
from jax.experimental import pallas as pl
from jax.experimental.pallas import tpu as pltpu


def _conv_bias_stats_kernel(x_ref, w_ref, b_ref, y_ref, sum_ref, sq_ref, *, tm, m_valid):
    """Pass 1: conv-as-matmul + bias for one M tile; accumulate per-channel stats."""
    i = pl.program_id(0)

    y = jnp.dot(x_ref[...], w_ref[...], preferred_element_type=jnp.float32)
    y = y + b_ref[...]                       # [TM, Cout]
    y_ref[...] = y

    # Padded (zero) im2col rows equal exactly `b` after the bias add, so use unmasked
    # column sums and subtract the padded-row contribution analytically.
    n_pad = jnp.maximum((i + 1) * tm - m_valid, 0).astype(jnp.float32)
    b = b_ref[...]
    col_sum = jnp.sum(y, axis=0, keepdims=True) - n_pad * b            # [1, Cout]
    col_sq = jnp.sum(y * y, axis=0, keepdims=True) - n_pad * (b * b)   # [1, Cout]

    @pl.when(i == 0)
    def _():
        sum_ref[...] = jnp.zeros_like(sum_ref)
        sq_ref[...] = jnp.zeros_like(sq_ref)

    sum_ref[...] += col_sum
    sq_ref[...] += col_sq


def _bn_lrelu_kernel(y_ref, scale_ref, shift_ref, o_ref, *, neg_slope):
    """Pass 2: y_hat = y * scale + shift (folded batch-norm), then LeakyReLU."""
    yh = y_ref[...] * scale_ref[...] + shift_ref[...]
    o_ref[...] = jnp.where(yh >= 0, yh, neg_slope * yh)


def _im2col(x_nchw, kh, kw, stride, pad):
    """NCHW -> [N*OH*OW, Cin*KH*KW] patch matrix (columns match OIHW weight flatten)."""
    n, c, h, w = x_nchw.shape
    xp = jnp.pad(x_nchw, ((0, 0), (0, 0), (pad, pad), (pad, pad)))
    oh = (h + 2 * pad - kh) // stride + 1
    ow = (w + 2 * pad - kw) // stride + 1
    patches = []
    for i in range(kh):
        for j in range(kw):
            patches.append(xp[:, :, i:i + stride * oh:stride, j:j + stride * ow:stride])
    p = jnp.stack(patches, axis=2)                       # [N, C, KH*KW, OH, OW]
    p = p.transpose(0, 3, 4, 1, 2).reshape(n * oh * ow, c * kh * kw)
    return p, oh, ow


def conv_bn_lrelu(x, w, b, *, stride, padding, eps=1e-5, neg_slope=0.01, tm=256):
    """x: [N, Cin, H, W] f32, w: [Cout, Cin, KH, KW], b: [Cout] -> [N, Cout, OH, OW]."""
    n, cin, h, wd = x.shape
    cout, _, kh, kw = w.shape
    k = cin * kh * kw

    xc, oh, ow = _im2col(x.astype(jnp.float32), kh, kw, stride, padding)
    m = xc.shape[0]

    # M tile: multiple of 8 sublanes.  K and Cout stay at their true sizes — no 128
    # padding in HBM (internal lane padding is free).  Only pad M up to a TM multiple
    # with zero rows (handled exactly by the in-kernel padded-row correction).
    tm = min(tm, pl.cdiv(m, 8) * 8)
    mp = pl.cdiv(m, tm) * tm
    if mp != m:
        xc = jnp.pad(xc, ((0, mp - m), (0, 0)))
    num_tiles = mp // tm

    w2d = w.reshape(cout, k).T.astype(jnp.float32)        # [K, Cout]
    b2d = b.reshape(1, cout).astype(jnp.float32)          # [1, Cout]

    # vmem budget note: 2 * (TM*K + TM*Cout) * 4B per double-buffered stream + weights;
    # trivially small here, kept well under the v7x 32 MiB scoped default.
    vmem_limit = 32 * 1024 * 1024

    # ---------------- Pass 1: conv + bias, accumulate per-channel sum / sumsq ----------------
    pass1 = functools.partial(_conv_bias_stats_kernel, tm=tm, m_valid=m)
    y_flat, csum, csq = pl.pallas_call(
        pass1,
        out_shape=(
            jax.ShapeDtypeStruct((mp, cout), jnp.float32),
            jax.ShapeDtypeStruct((1, cout), jnp.float32),
            jax.ShapeDtypeStruct((1, cout), jnp.float32),
        ),
        grid=(num_tiles,),
        in_specs=[
            pl.BlockSpec((tm, k), lambda i: (i, 0)),      # x tile: streamed / pipelined
            pl.BlockSpec((k, cout), lambda i: (0, 0)),    # weights: resident
            pl.BlockSpec((1, cout), lambda i: (0, 0)),    # bias: resident
        ],
        out_specs=(
            pl.BlockSpec((tm, cout), lambda i: (i, 0)),   # y tile
            pl.BlockSpec((1, cout), lambda i: (0, 0)),    # sum accumulator (constant block)
            pl.BlockSpec((1, cout), lambda i: (0, 0)),    # sumsq accumulator
        ),
        compiler_params=pltpu.CompilerParams(
            dimension_semantics=("arbitrary",),           # stats accumulation = reduction over M
            vmem_limit_bytes=vmem_limit,
        ),
    )(xc, w2d, b2d)

    # Tiny per-channel stats -> folded BN scale/shift (biased variance, like torch BN training).
    # E[y^2] - mean^2 in f32; values are O(1) here so cancellation is negligible.
    mean = csum / jnp.float32(m)                          # [1, Cout]
    var = csq / jnp.float32(m) - mean * mean
    inv_std = jax.lax.rsqrt(var + eps)
    scale = inv_std
    shift = -mean * inv_std

    # ---------------- Pass 2: normalize + LeakyReLU ----------------
    pass2 = functools.partial(_bn_lrelu_kernel, neg_slope=neg_slope)
    out = pl.pallas_call(
        pass2,
        out_shape=jax.ShapeDtypeStruct((mp, cout), jnp.float32),
        grid=(num_tiles,),
        in_specs=[
            pl.BlockSpec((tm, cout), lambda i: (i, 0)),
            pl.BlockSpec((1, cout), lambda i: (0, 0)),
            pl.BlockSpec((1, cout), lambda i: (0, 0)),
        ],
        out_specs=pl.BlockSpec((tm, cout), lambda i: (i, 0)),
        compiler_params=pltpu.CompilerParams(
            dimension_semantics=("parallel",),            # independent tiles -> megacore on v7x
            vmem_limit_bytes=vmem_limit,
        ),
    )(y_flat, scale, shift)

    # Module contract is NCHW (PyTorch); if a downstream consumer accepts NHWC this
    # transpose can be dropped entirely.
    y = out[:m].reshape(n, oh, ow, cout).transpose(0, 3, 1, 2)
    return y


def _reference(x, w, b, *, stride, padding, eps=1e-5, neg_slope=0.01):
    y = jax.lax.conv_general_dilated(
        x.astype(jnp.float32), w.astype(jnp.float32),
        window_strides=(stride, stride),
        padding=[(padding, padding), (padding, padding)],
        dimension_numbers=("NCHW", "OIHW", "NCHW"),
    ) + b[None, :, None, None]
    mean = y.mean(axis=(0, 2, 3), keepdims=True)
    var = y.var(axis=(0, 2, 3), keepdims=True)  # biased, like torch BN training
    yh = (y - mean) / jnp.sqrt(var + eps)
    return jnp.where(yh >= 0, yh, neg_slope * yh)


if __name__ == "__main__":
    # Module config: conv(inp=4, out=8, kernel_size=3, stride=1, padd=1)
    N, CIN, H, W = 2, 4, 16, 16
    COUT, KH, KW = 8, 3, 3
    STRIDE, PAD = 1, 1

    key = jax.random.PRNGKey(0)
    kx, kw_, kb = jax.random.split(key, 3)
    x = jax.random.normal(kx, (N, CIN, H, W), dtype=jnp.float32)
    fan_in = CIN * KH * KW
    bound = 1.0 / (fan_in ** 0.5)
    w = jax.random.uniform(kw_, (COUT, CIN, KH, KW), jnp.float32, -bound, bound)
    b = jax.random.uniform(kb, (COUT,), jnp.float32, -bound, bound)

    y = conv_bn_lrelu(x, w, b, stride=STRIDE, padding=PAD)
    y = jax.block_until_ready(y)

    y_ref = _reference(x, w, b, stride=STRIDE, padding=PAD)
    assert y.shape == (N, COUT, H, W), y.shape
    assert jnp.allclose(y, y_ref, atol=1e-4, rtol=1e-4), float(jnp.max(jnp.abs(y - y_ref)))

    print("KERNEL_OK")
</pallas_src>

<mosaic_0001>
module attributes {stable_mosaic.version = 11 : i64} {
  func.func @_conv_bias_stats_kernel(%arg0: i32, %arg1: memref<256x36xf32, #tpu.memory_space<vmem>>, %arg2: memref<36x8xf32, #tpu.memory_space<vmem>>, %arg3: memref<1x8xf32, #tpu.memory_space<vmem>>, %arg4: memref<256x8xf32, #tpu.memory_space<vmem>>, %arg5: memref<1x8xf32, #tpu.memory_space<vmem>>, %arg6: memref<1x8xf32, #tpu.memory_space<vmem>>) attributes {dimension_semantics = [#tpu.dimension_semantics<arbitrary>], iteration_bounds = array<i64: 2>, scalar_prefetch = 0 : i64, scratch_operands = 0 : i64, tpu.core_type = #tpu.core_type<tc>, window_params = [{transform_indices = @transform_0, window_bounds = array<i64: 256, 36>}, {pipeline_mode = #tpu.pipeline_mode<synchronous>, transform_indices = @transform_1, window_bounds = array<i64: 36, 8>}, {pipeline_mode = #tpu.pipeline_mode<synchronous>, transform_indices = @transform_2, window_bounds = array<i64: 1, 8>}, {transform_indices = @transform_3, window_bounds = array<i64: 256, 8>}, {pipeline_mode = #tpu.pipeline_mode<synchronous>, transform_indices = @transform_4, window_bounds = array<i64: 1, 8>}, {pipeline_mode = #tpu.pipeline_mode<synchronous>, transform_indices = @transform_5, window_bounds = array<i64: 1, 8>}]} {
    %c0 = arith.constant 0 : index
    %c0_0 = arith.constant 0 : index
    %0 = vector.load %arg1[%c0, %c0_0] : memref<256x36xf32, #tpu.memory_space<vmem>>, vector<256x36xf32>
    %c0_1 = arith.constant 0 : index
    %c0_2 = arith.constant 0 : index
    %1 = vector.load %arg2[%c0_1, %c0_2] : memref<36x8xf32, #tpu.memory_space<vmem>>, vector<36x8xf32>
    %cst = arith.constant dense<0.000000e+00> : vector<256x8xf32>
    %2 = tpu.matmul %0, %1, %cst {dimension_numbers = #tpu.dot_dimension_numbers<[1], [0], [0], [1], [0, 0, 1, 1], [], []>} : vector<256x36xf32>, vector<36x8xf32>, vector<256x8xf32> -> vector<256x8xf32>
    %c0_3 = arith.constant 0 : index
    %c0_4 = arith.constant 0 : index
    %3 = vector.load %arg3[%c0_3, %c0_4] : memref<1x8xf32, #tpu.memory_space<vmem>>, vector<1x8xf32>
    %4 = vector.broadcast %3 : vector<1x8xf32> to vector<256x8xf32>
    %5 = arith.addf %2, %4 : vector<256x8xf32>
    %c0_5 = arith.constant 0 : index
    %c0_6 = arith.constant 0 : index
    %6 = vector.load %arg4[%c0_5, %c0_6] : memref<256x8xf32, #tpu.memory_space<vmem>>, vector<256x8xf32>
    tpu.vector_store %arg4[%c0_5, %c0_6], %5 {strides = array<i32>} : memref<256x8xf32, #tpu.memory_space<vmem>>, vector<256x8xf32>,
    %c1_i32 = arith.constant 1 : i32
    %7 = arith.addi %arg0, %c1_i32 : i32
    %c256_i32 = arith.constant 256 : i32
    %8 = arith.muli %7, %c256_i32 : i32
    %c512_i32 = arith.constant 512 : i32
    %9 = arith.subi %8, %c512_i32 : i32
    %c0_i32 = arith.constant 0 : i32
    %10 = arith.maxsi %9, %c0_i32 : i32
    %11 = arith.sitofp %10 : i32 to f32
    %c0_7 = arith.constant 0 : index
    %c0_8 = arith.constant 0 : index
    %12 = vector.load %arg3[%c0_7, %c0_8] : memref<1x8xf32, #tpu.memory_space<vmem>>, vector<1x8xf32>
    %cst_9 = arith.constant dense<0.000000e+00> : vector<8xf32>
    %13 = vector.multi_reduction <add>, %5, %cst_9 [0] : vector<256x8xf32> to vector<8xf32>
    %14 = vector.shape_cast %13 : vector<8xf32> to vector<1x8xf32>
    %15 = vector.broadcast %11 : f32 to vector<1x8xf32>
    %16 = arith.mulf %15, %12 : vector<1x8xf32>
    %17 = arith.subf %14, %16 : vector<1x8xf32>
    %18 = arith.mulf %5, %5 : vector<256x8xf32>
    %cst_10 = arith.constant dense<0.000000e+00> : vector<8xf32>
    %19 = vector.multi_reduction <add>, %18, %cst_10 [0] : vector<256x8xf32> to vector<8xf32>
    %20 = vector.shape_cast %19 : vector<8xf32> to vector<1x8xf32>
    %21 = arith.mulf %12, %12 : vector<1x8xf32>
    %22 = vector.broadcast %11 : f32 to vector<1x8xf32>
    %23 = arith.mulf %22, %21 : vector<1x8xf32>
    %24 = arith.subf %20, %23 : vector<1x8xf32>
    %c0_i32_11 = arith.constant 0 : i32
    %25 = arith.cmpi eq, %arg0, %c0_i32_11 : i32
    %26 = arith.extui %25 : i1 to i32
    %c0_i32_12 = arith.constant 0 : i32
    %27 = arith.cmpi ne, %26, %c0_i32_12 : i32
    scf.if %27 {
      %cst_21 = arith.constant 0.000000e+00 : f32
      %34 = vector.broadcast %cst_21 : f32 to vector<1x8xf32>
      %c0_22 = arith.constant 0 : index
      %c0_23 = arith.constant 0 : index
      %35 = vector.load %arg5[%c0_22, %c0_23] : memref<1x8xf32, #tpu.memory_space<vmem>>, vector<1x8xf32>
      tpu.vector_store %arg5[%c0_22, %c0_23], %34 {strides = array<i32>} : memref<1x8xf32, #tpu.memory_space<vmem>>, vector<1x8xf32>,
      %cst_24 = arith.constant 0.000000e+00 : f32
      %36 = vector.broadcast %cst_24 : f32 to vector<1x8xf32>
      %c0_25 = arith.constant 0 : index
      %c0_26 = arith.constant 0 : index
      %37 = vector.load %arg6[%c0_25, %c0_26] : memref<1x8xf32, #tpu.memory_space<vmem>>, vector<1x8xf32>
      tpu.vector_store %arg6[%c0_25, %c0_26], %36 {strides = array<i32>} : memref<1x8xf32, #tpu.memory_space<vmem>>, vector<1x8xf32>,
    } else {
    }
    %c0_13 = arith.constant 0 : index
    %c0_14 = arith.constant 0 : index
    %28 = vector.load %arg5[%c0_13, %c0_14] : memref<1x8xf32, #tpu.memory_space<vmem>>, vector<1x8xf32>
    %29 = arith.addf %28, %17 : vector<1x8xf32>
    %c0_15 = arith.constant 0 : index
    %c0_16 = arith.constant 0 : index
    %30 = vector.load %arg5[%c0_15, %c0_16] : memref<1x8xf32, #tpu.memory_space<vmem>>, vector<1x8xf32>
    tpu.vector_store %arg5[%c0_15, %c0_16], %29 {strides = array<i32>} : memref<1x8xf32, #tpu.memory_space<vmem>>, vector<1x8xf32>,
    %c0_17 = arith.constant 0 : index
    %c0_18 = arith.constant 0 : index
    %31 = vector.load %arg6[%c0_17, %c0_18] : memref<1x8xf32, #tpu.memory_space<vmem>>, vector<1x8xf32>
    %32 = arith.addf %31, %24 : vector<1x8xf32>
    %c0_19 = arith.constant 0 : index
    %c0_20 = arith.constant 0 : index
    %33 = vector.load %arg6[%c0_19, %c0_20] : memref<1x8xf32, #tpu.memory_space<vmem>>, vector<1x8xf32>
    tpu.vector_store %arg6[%c0_19, %c0_20], %32 {strides = array<i32>} : memref<1x8xf32, #tpu.memory_space<vmem>>, vector<1x8xf32>,
    return
  }
  func.func @transform_0(%arg0: i32) -> (i32, i32) {
    %c0_i32 = arith.constant 0 : i32
    %c0_i32_0 = arith.constant 0 : i32
    return %arg0, %c0_i32 : i32, i32
  }
  func.func @transform_1(%arg0: i32) -> (i32, i32) {
    %c0_i32 = arith.constant 0 : i32
    %c0_i32_0 = arith.constant 0 : i32
    %c0_i32_1 = arith.constant 0 : i32
    return %c0_i32, %c0_i32_0 : i32, i32
  }
  func.func @transform_2(%arg0: i32) -> (i32, i32) {
    %c0_i32 = arith.constant 0 : i32
    %c0_i32_0 = arith.constant 0 : i32
    %c0_i32_1 = arith.constant 0 : i32
    return %c0_i32, %c0_i32_0 : i32, i32
  }
  func.func @transform_3(%arg0: i32) -> (i32, i32) {
    %c0_i32 = arith.constant 0 : i32
    %c0_i32_0 = arith.constant 0 : i32
    return %arg0, %c0_i32 : i32, i32
  }
  func.func @transform_4(%arg0: i32) -> (i32, i32) {
    %c0_i32 = arith.constant 0 : i32
    %c0_i32_0 = arith.constant 0 : i32
    %c0_i32_1 = arith.constant 0 : i32
    return %c0_i32, %c0_i32_0 : i32, i32
  }
  func.func @transform_5(%arg0: i32) -> (i32, i32) {
    %c0_i32 = arith.constant 0 : i32
    %c0_i32_0 = arith.constant 0 : i32
    %c0_i32_1 = arith.constant 0 : i32
    return %c0_i32, %c0_i32_0 : i32, i32
  }
}

</mosaic_0001>

<llo_original>
// kernel: tpu_custom_call.1
$region0: #{tpu_custom_call.1}
  #allocation0 [shape = 'u32[]', space=smem, size = 0x4, offset = 0x4, fixed_abs, tag = 'smem constant byte address 0x4 - core index']
  #allocation1 [shape = 'u32[72,128]{1,0:T(1,128)}', space=vmem, size = 0x9000, scoped, tag = 'internal scratch']
  %s0 = inlined_call_operand.vmem [shape: f32[512,36], index: 0, kind: input, shape index: {}]
  %s1 = inlined_call_operand.vmem [shape: f32[36,8], index: 1, kind: input, shape index: {}]
  %s2 = inlined_call_operand.vmem [shape: f32[1,8], index: 2, kind: input, shape index: {}]
  %s3 = inlined_call_operand.vmem [shape: f32[512,8], index: 3, kind: output, shape index: {0}]
  %s4 = inlined_call_operand.hbm [shape: f32[1,8], index: 4, kind: output, shape index: {1}]
  %s5 = inlined_call_operand.hbm [shape: f32[1,8], index: 5, kind: output, shape index: {2}]
  %6 = xla_tuple %s3, %s4, %s5
  %s7 = sld [smem:[#allocation0]]
  $region65: #{tpu_custom_call.1} parent=0
    _
  %s9 = ssub.s32 1, %s7
  %s10 = scalar_select 0, %s9, %s7
  $region1: #{tpu_custom_call.1} parent=0
    #allocation2 [shape = 'u8[512]{0}', space=vmem, size = 0x400, scoped, tag = 'output window, operand 1, single buffered']
    #allocation3 [shape = 's32[2]{0}', space=sflag, size = 0x8, scoped, tag = 'scoped memory for tpu_custom_call.1']
    #allocation4 [shape = 'u8[512]{0}', space=vmem, size = 0x400, scoped, tag = 'output window, operand 2, single buffered']
    #allocation5 [shape = 's32[1]{0}', space=sflag, size = 0x4, scoped, tag = 'scoped memory for tpu_custom_call.1']
    %11 = vsyncpa [#allocation3], 0
    %12 = vsyncpa [#allocation5], 0
    loop: start=0, step=1, limit=4
    $region2: #{tpu_custom_call.1} parent=1 // loop_pre_header
      _
    $region3: #{tpu_custom_call.1} parent=1 // loop_header
      %s14 = sphi 0, %s18
      %p15 = scmp.ge.s32.totalorder %s14, 4
      %s24 = sphi 0, %s26
      %s27 = sphi 0, %s24
      %s28 = sphi 0, %s27
      %s44 = sphi 0, %s28
      %s48 = sphi 0, %s48
      %s50 = sphi 0, %s48
      %s51 = sphi 0, %s50
      %s65 = sphi 0, %s51
      %s69 = sphi 0, %s69
      %s71 = sphi 0, %s69
      %s72 = sphi 0, %s71
      %s86 = sphi 0, %s72
      %s92 = sphi 0, %s94
      %s95 = sphi 0, %s92
      %s96 = sphi 0, %s95
      %s112 = sphi 0, %s96
      %s116 = sphi 0, %s116
      %s118 = sphi 0, %s116
      %s119 = sphi 0, %s118
      %s133 = sphi 0, %s119
      %s137 = sphi 0, %s137
      %s139 = sphi 0, %s137
      %s140 = sphi 0, %s139
      %s154 = sphi 0, %s140
    $region4: #{tpu_custom_call.1} parent=1 // loop_header_branch
      %17 = sbr.rel (%p15) target = $region8
    $region5: #{tpu_custom_call.1} parent=1 // loop_body
      %s19 = ssub.s32 %s14, 1
      %s20 = ssub.s32 %s14, 2
      %s21 = sadd.s32 %s14, 1
      %s22 = ssub.s32 %s14, %s21
      %p23 = scmp.eq.s32.totalorder %s22, 0
      %s25 = sadd.s32 %s24, 1
      %s26 = scalar_select %p23, %s24, %s25
      %p29 = pneg %p23
      %p30 = scmp.eq.s32.totalorder %s14, 1
      %p31 = por %p29, %p30
      %p32 = scmp.ne.s32.totalorder %s24, %s27
      %p33 = scmp.eq.s32.totalorder %s14, 0
      %p34 = por %p32, %p33
      %p35 = scmp.ne.s32.totalorder %s24, %s27
      %p36 = scmp.eq.s32.totalorder %s19, 1
      %p37 = por %p35, %p36
      %p38 = scmp.ne.s32.totalorder %s27, %s28
      %p39 = scmp.eq.s32.totalorder %s19, 0
      %p40 = por %p38, %p39
      %p41 = scmp.ne.s32.totalorder %s27, %s28
      %p42 = scmp.eq.s32.totalorder %s20, 1
      %p43 = por %p41, %p42
      %p45 = scmp.ne.s32.totalorder %s28, %s44
      %p46 = scmp.eq.s32.totalorder %s20, 0
      %p47 = por %p45, %p46
      %s49 = sadd.s32 %s48, 1
      %p52 = scmp.eq.s32.totalorder %s14, 1
      %p53 = scmp.ne.s32.totalorder %s48, %s50
      %p54 = scmp.eq.s32.totalorder %s14, 0
      %p55 = por %p53, %p54
      %p56 = scmp.ne.s32.totalorder %s48, %s50
      %p57 = scmp.eq.s32.totalorder %s19, 1
      %p58 = por %p56, %p57
      %p59 = scmp.ne.s32.totalorder %s50, %s51
      %p60 = scmp.eq.s32.totalorder %s19, 0
      %p61 = por %p59, %p60
      %p62 = scmp.ne.s32.totalorder %s50, %s51
      %p63 = scmp.eq.s32.totalorder %s20, 1
      %p64 = por %p62, %p63
      %p66 = scmp.ne.s32.totalorder %s51, %s65
      %p67 = scmp.eq.s32.totalorder %s20, 0
      %p68 = por %p66, %p67
      %s70 = sadd.s32 %s69, 1
      %p73 = scmp.eq.s32.totalorder %s14, 1
      %p74 = scmp.ne.s32.totalorder %s69, %s71
      %p75 = scmp.eq.s32.totalorder %s14, 0
      %p76 = por %p74, %p75
      %p77 = scmp.ne.s32.totalorder %s69, %s71
      %p78 = scmp.eq.s32.totalorder %s19, 1
      %p79 = por %p77, %p78
      %p80 = scmp.ne.s32.totalorder %s71, %s72
      %p81 = scmp.eq.s32.totalorder %s19, 0
      %p82 = por %p80, %p81
      %p83 = scmp.ne.s32.totalorder %s71, %s72
      %p84 = scmp.eq.s32.totalorder %s20, 1
      %p85 = por %p83, %p84
      %p87 = scmp.ne.s32.totalorder %s72, %s86
      %p88 = scmp.eq.s32.totalorder %s20, 0
      %p89 = por %p87, %p88
      %s90 = ssub.s32 %s14, %s21
      %p91 = scmp.eq.s32.totalorder %s90, 0
      %s93 = sadd.s32 %s92, 1
      %s94 = scalar_select %p91, %s92, %s93
      %p97 = pneg %p91
      %p98 = scmp.eq.s32.totalorder %s14, 1
      %p99 = por %p97, %p98
      %p100 = scmp.ne.s32.totalorder %s92, %s95
      %p101 = scmp.eq.s32.totalorder %s14, 0
      %p102 = por %p100, %p101
      %p103 = scmp.ne.s32.totalorder %s92, %s95
      %p104 = scmp.eq.s32.totalorder %s19, 1
      %p105 = por %p103, %p104
      %p106 = scmp.ne.s32.totalorder %s95, %s96
      %p107 = scmp.eq.s32.totalorder %s19, 0
      %p108 = por %p106, %p107
      %p109 = scmp.ne.s32.totalorder %s95, %s96
      %p110 = scmp.eq.s32.totalorder %s20, 1
      %p111 = por %p109, %p110
      %p113 = scmp.ne.s32.totalorder %s96, %s112
      %p114 = scmp.eq.s32.totalorder %s20, 0
      %p115 = por %p113, %p114
      %s117 = sadd.s32 %s116, 1
      %p120 = scmp.eq.s32.totalorder %s14, 1
      %p121 = scmp.ne.s32.totalorder %s116, %s118
      %p122 = scmp.eq.s32.totalorder %s14, 0
      %p123 = por %p121, %p122
      %p124 = scmp.ne.s32.totalorder %s116, %s118
      %p125 = scmp.eq.s32.totalorder %s19, 1
      %p126 = por %p124, %p125
      %p127 = scmp.ne.s32.totalorder %s118, %s119
      %p128 = scmp.eq.s32.totalorder %s19, 0
      %p129 = por %p127, %p128
      %p130 = scmp.ne.s32.totalorder %s118, %s119
      %p131 = scmp.eq.s32.totalorder %s20, 1
      %p132 = por %p130, %p131
      %p134 = scmp.ne.s32.totalorder %s119, %s133
      %p135 = scmp.eq.s32.totalorder %s20, 0
      %p136 = por %p134, %p135
      %s138 = sadd.s32 %s137, 1
      %p141 = scmp.eq.s32.totalorder %s14, 1
      %p142 = scmp.ne.s32.totalorder %s137, %s139
      %p143 = scmp.eq.s32.totalorder %s14, 0
      %p144 = por %p142, %p143
      %p145 = scmp.ne.s32.totalorder %s137, %s139
      %p146 = scmp.eq.s32.totalorder %s19, 1
      %p147 = por %p145, %p146
      %p148 = scmp.ne.s32.totalorder %s139, %s140
      %p149 = scmp.eq.s32.totalorder %s19, 0
      %p150 = por %p148, %p149
      %p151 = scmp.ne.s32.totalorder %s139, %s140
      %p152 = scmp.eq.s32.totalorder %s20, 1
      %p153 = por %p151, %p152
      %p155 = scmp.ne.s32.totalorder %s140, %s154
      %p156 = scmp.eq.s32.totalorder %s20, 0
      %p157 = por %p155, %p156
      %p158 = scmp.le.s32.totalorder 1, %s14
      %p159 = scmp.lt.s32.totalorder %s14, 3
      %p160 = pnand %p158, %p159
      %p161 = pneg %p160
      // Predicated region
      $region9: #{tpu_custom_call.1} parent=5 // pred_check
        _
      $region10: #{tpu_custom_call.1} parent=5 // pred_check_branch
        %163 = sbr.rel (%p160) target = $region12
      $region11: #{tpu_custom_call.1} parent=5 // pred_region
        %s164 = ssub.s32 %s14, 1
        // Predicated region
        $region13: #{tpu_custom_call.1} parent=11 // pred_check
          %p165 = pneg %p61
        $region14: #{tpu_custom_call.1} parent=11 // pred_check_branch
          %167 = sbr.rel (%p165) target = $region16
        $region15: #{tpu_custom_call.1} parent=11 // pred_region
          _
        $region16: #{tpu_custom_call.1} parent=11 // pred_fallthru
          _
        // Predicated region
        $region17: #{tpu_custom_call.1} parent=11 // pred_check
          %p168 = pneg %p82
        $region18: #{tpu_custom_call.1} parent=11 // pred_check_branch
          %170 = sbr.rel (%p168) target = $region20
        $region19: #{tpu_custom_call.1} parent=11 // pred_region
          _
        $region20: #{tpu_custom_call.1} parent=11 // pred_fallthru
          _
      $region12: #{tpu_custom_call.1} parent=5 // pred_fallthru
        _
      %p171 = scmp.lt.s32.totalorder %s14, 2
      // Predicated region
      $region21: #{tpu_custom_call.1} parent=5 // pred_check
        %p172 = pneg %p171
      $region22: #{tpu_custom_call.1} parent=5 // pred_check_branch
        %174 = sbr.rel (%p172) target = $region24
      $region23: #{tpu_custom_call.1} parent=5 // pred_region
        // Predicated region
        $region25: #{tpu_custom_call.1} parent=23 // pred_check
          %p175 = pneg %p34
        $region26: #{tpu_custom_call.1} parent=23 // pred_check_branch
          %177 = sbr.rel (%p175) target = $region28
        $region27: #{tpu_custom_call.1} parent=23 // pred_region
          %s178 = smul.u32 32, %s14
          %p179 = scmp.lt.s32.totalorder %s178, 63
          %s180 = scalar_select %p179, %s178, 63
          %s181 = smul.addr %s180, 8
          %s182 = scalar_lea.vmem %s0, %s181
          %s183 = smul.u32 32, %s14
        $region28: #{tpu_custom_call.1} parent=23 // pred_fallthru
          _
      $region24: #{tpu_custom_call.1} parent=5 // pred_fallthru
        _
      %p184 = scmp.le.s32.totalorder 1, %s14
      %p185 = scmp.lt.s32.totalorder %s14, 3
      %p186 = pnand %p184, %p185
      %p187 = pneg %p186
      // Predicated region
      $region29: #{tpu_custom_call.1} parent=5 // pred_check
        _
      $region30: #{tpu_custom_call.1} parent=5 // pred_check_branch
        %189 = sbr.rel (%p186) target = $region32
      $region31: #{tpu_custom_call.1} parent=5 // pred_region
        %s190 = ssub.s32 %s14, 1
        %s191 = smul.u32 32, %s19
        %p192 = scmp.lt.s32.totalorder %s191, 63
        %s193 = scalar_select %p192, %s191, 63
        %s194 = smul.addr %s193, 8
        %s195 = scalar_lea.vmem %s0, %s194
        %p196 = pneg %p40
        %p197 = pneg %p37
        %p198 = pneg %p61
        %p199 = pneg %p58
        %p200 = pneg %p82
        %p201 = pneg %p79
        %p202 = pneg %p108
        %p203 = pneg %p105
        %s204 = smul.u32 32, %s19
        %p205 = scmp.lt.s32.totalorder %s204, 63
        %s206 = scalar_select %p205, %s204, 63
        %s207 = smul.addr %s206, 8
        %s208 = scalar_lea.vmem %s3, %s207
        %p209 = pneg %p129
        %p210 = pneg %p126
        %p211 = pneg %p150
        %p212 = pneg %p147
        %s213 = smul.u32 32, %s19
        %p214 = scmp.lt.s32.totalorder %s213, 63
        %s215 = scalar_select %p214, %s213, 63
        %s216 = smul.addr %s215, 8
        %s217 = scalar_lea.vmem %s0, %s216
        %s218 = smul.u32 32, %s19
        %s219 = smul.u32 32, %s19
        %p220 = scmp.lt.s32.totalorder %s219, 63
        %s221 = scalar_select %p220, %s219, 63
        %s222 = smul.addr %s221, 8
        %s223 = scalar_lea.vmem %s3, %s222
        %s224 = smul.u32 32, %s19
        %v225 = vld [vmem:[%s217] sm:$0xff]
        %v226 = vld [vmem:[%s217 + $0x8] sm:$0xff]
        %v227 = vld [vmem:[%s217 + $0x10] sm:$0xff]
        %v228 = vld [vmem:[%s217 + $0x18] sm:$0xff]
        %v229 = vld [vmem:[%s217 + $0x20] sm:$0xff]
        %v230 = vld [vmem:[%s217 + $0x28] sm:$0xff]
        %v231 = vld [vmem:[%s217 + $0x30] sm:$0xff]
        %v232 = vld [vmem:[%s217 + $0x38] sm:$0xff]
        %v233 = vld [vmem:[%s217 + $0x40] sm:$0xff]
        %v234 = vld [vmem:[%s217 + $0x48] sm:$0xff]
        %v235 = vld [vmem:[%s217 + $0x50] sm:$0xff]
        %v236 = vld [vmem:[%s217 + $0x58] sm:$0xff]
        %v237 = vld [vmem:[%s217 + $0x60] sm:$0xff]
        %v238 = vld [vmem:[%s217 + $0x68] sm:$0xff]
        %v239 = vld [vmem:[%s217 + $0x70] sm:$0xff]
        %v240 = vld [vmem:[%s217 + $0x78] sm:$0xff]
        %v241 = vld [vmem:[%s217 + $0x80] sm:$0xff]
        %v242 = vld [vmem:[%s217 + $0x88] sm:$0xff]
        %v243 = vld [vmem:[%s217 + $0x90] sm:$0xff]
        %v244 = vld [vmem:[%s217 + $0x98] sm:$0xff]
        %v245 = vld [vmem:[%s217 + $0xa0] sm:$0xff]
        %v246 = vld [vmem:[%s217 + $0xa8] sm:$0xff]
        %v247 = vld [vmem:[%s217 + $0xb0] sm:$0xff]
        %v248 = vld [vmem:[%s217 + $0xb8] sm:$0xff]
        %v249 = vld [vmem:[%s217 + $0xc0] sm:$0xff]
        %v250 = vld [vmem:[%s217 + $0xc8] sm:$0xff]
        %v251 = vld [vmem:[%s217 + $0xd0] sm:$0xff]
        %v252 = vld [vmem:[%s217 + $0xd8] sm:$0xff]
        %v253 = vld [vmem:[%s217 + $0xe0] sm:$0xff]
        %v254 = vld [vmem:[%s217 + $0xe8] sm:$0xff]
        %v255 = vld [vmem:[%s217 + $0xf0] sm:$0xff]
        %v256 = vld [vmem:[%s217 + $0xf8] sm:$0xff]
        %v257 = vld [vmem:[%s1] sm:$0xff]
        %v258 = vld [vmem:[%s1 + $0x8] sm:$0xff]
        %v259 = vld [vmem:[%s1 + $0x10] sm:$0xff]
        %v260 = vld [vmem:[%s1 + $0x18] sm:$0xff]
        %v261 = vld [vmem:[%s1 + $0x20] sm:$0xf]
        %v262 = vld [vmem:[%s2] sm:$0x1]
        %v264 = vperm.slane %v262, 0
        %vm266 = vcmask 293888
        %v268 = vsel %vm266, %v225, 0
        %v271 = vsel %vm266, %v226, 0
        %v274 = vsel %vm266, %v227, 0
        %v277 = vsel %vm266, %v228, 0
        %v280 = vsel %vm266, %v229, 0
        %v283 = vsel %vm266, %v230, 0
        %v286 = vsel %vm266, %v231, 0
        %v289 = vsel %vm266, %v232, 0
        %v292 = vsel %vm266, %v233, 0
        %v295 = vsel %vm266, %v234, 0
        %v298 = vsel %vm266, %v235, 0
        %v301 = vsel %vm266, %v236, 0
        %v304 = vsel %vm266, %v237, 0
        %v307 = vsel %vm266, %v238, 0
        %v310 = vsel %vm266, %v239, 0
        %v313 = vsel %vm266, %v240, 0
        %v316 = vsel %vm266, %v241, 0
        %v319 = vsel %vm266, %v242, 0
        %v322 = vsel %vm266, %v243, 0
        %v325 = vsel %vm266, %v244, 0
        %v328 = vsel %vm266, %v245, 0
        %v331 = vsel %vm266, %v246, 0
        %v334 = vsel %vm266, %v247, 0
        %v337 = vsel %vm266, %v248, 0
        %v340 = vsel %vm266, %v249, 0
        %v343 = vsel %vm266, %v250, 0
        %v346 = vsel %vm266, %v251, 0
        %v349 = vsel %vm266, %v252, 0
        %v352 = vsel %vm266, %v253, 0
        %v355 = vsel %vm266, %v254, 0
        %v358 = vsel %vm266, %v255, 0
        %v361 = vsel %vm266, %v256, 0
        %vm363 = vcmask 1043456
        %v365 = vsel %vm363, %v261, 0
        %367 = vmatpush.msra.mxu0 0.0
        %368 = vmatpush.msra.mxu0 0.0
        %369 = vmatpush.msra.mxu0 0.0
        %370 = vmatpush.msra.mxu0 0.0
        %371 = vmatpush.msra.mxu0 0.0
        %372 = vmatpush.msra.mxu0 0.0
        %373 = vmatpush.msra.mxu0 0.0
        %374 = vmatpush.msra.mxu0 0.0
        %375 = vmatpush.msra.mxu0 0.0
        %376 = vmatpush.msra.mxu0 0.0
        %377 = vmatpush.msra.mxu0 0.0
        %378 = vmatpush.msra.mxu0 %v365
        %379 = vmatpush.msra.mxu0 %v260
        %380 = vmatpush.msra.mxu0 %v259
        %381 = vmatpush.msra.mxu0 %v258
        %382 = vmatpush.msra.mxu0 %v257
        %383 = vmatmul.f32.gmra.mxu0 %v268
        %v384 = vpop.f32.mrf.mxu0
        %v385 = vadd.f32 %v264, %v384
        %386 = vmatmul.f32.gmra.mxu0 %v271
        %v387 = vpop.f32.mrf.mxu0
        %v388 = vadd.f32 %v264, %v387
        %389 = vmatmul.f32.gmra.mxu0 %v274
        %v390 = vpop.f32.mrf.mxu0
        %v391 = vadd.f32 %v264, %v390
        %392 = vmatmul.f32.gmra.mxu0 %v277
        %v393 = vpop.f32.mrf.mxu0
        %v394 = vadd.f32 %v264, %v393
        %395 = vmatmul.f32.gmra.mxu0 %v280
        %v396 = vpop.f32.mrf.mxu0
        %v397 = vadd.f32 %v264, %v396
        %398 = vmatmul.f32.gmra.mxu0 %v283
        %v399 = vpop.f32.mrf.mxu0
        %v400 = vadd.f32 %v264, %v399
        %401 = vmatmul.f32.gmra.mxu0 %v286
        %v402 = vpop.f32.mrf.mxu0
        %v403 = vadd.f32 %v264, %v402
        %404 = vmatmul.f32.gmra.mxu0 %v289
        %v405 = vpop.f32.mrf.mxu0
        %v406 = vadd.f32 %v264, %v405
        %407 = vmatmul.f32.gmra.mxu0 %v292
        %v408 = vpop.f32.mrf.mxu0
        %v409 = vadd.f32 %v264, %v408
        %410 = vmatmul.f32.gmra.mxu0 %v295
        %v411 = vpop.f32.mrf.mxu0
        %v412 = vadd.f32 %v264, %v411
        %413 = vmatmul.f32.gmra.mxu0 %v298
        %v414 = vpop.f32.mrf.mxu0
        %v415 = vadd.f32 %v264, %v414
        %416 = vmatmul.f32.gmra.mxu0 %v301
        %v417 = vpop.f32.mrf.mxu0
        %v418 = vadd.f32 %v264, %v417
        %419 = vmatmul.f32.gmra.mxu0 %v304
        %v420 = vpop.f32.mrf.mxu0
        %v421 = vadd.f32 %v264, %v420
        %422 = vmatmul.f32.gmra.mxu0 %v307
        %v423 = vpop.f32.mrf.mxu0
        %v424 = vadd.f32 %v264, %v423
        %425 = vmatmul.f32.gmra.mxu0 %v310
        %v426 = vpop.f32.mrf.mxu0
        %v427 = vadd.f32 %v264, %v426
        %428 = vmatmul.f32.gmra.mxu0 %v313
        %v429 = vpop.f32.mrf.mxu0
        %v430 = vadd.f32 %v264, %v429
        %431 = vmatmul.f32.gmra.mxu0 %v316
        %v432 = vpop.f32.mrf.mxu0
        %v433 = vadd.f32 %v264, %v432
        %434 = vmatmul.f32.gmra.mxu0 %v319
        %v435 = vpop.f32.mrf.mxu0
        %v436 = vadd.f32 %v264, %v435
        %437 = vmatmul.f32.gmra.mxu0 %v322
        %v438 = vpop.f32.mrf.mxu0
        %v439 = vadd.f32 %v264, %v438
        %440 = vmatmul.f32.gmra.mxu0 %v325
        %v441 = vpop.f32.mrf.mxu0
        %v442 = vadd.f32 %v264, %v441
        %443 = vmatmul.f32.gmra.mxu0 %v328
        %v444 = vpop.f32.mrf.mxu0
        %v445 = vadd.f32 %v264, %v444
        %446 = vmatmul.f32.gmra.mxu0 %v331
        %v447 = vpop.f32.mrf.mxu0
        %v448 = vadd.f32 %v264, %v447
        %449 = vmatmul.f32.gmra.mxu0 %v334
        %v450 = vpop.f32.mrf.mxu0
        %v451 = vadd.f32 %v264, %v450
        %452 = vmatmul.f32.gmra.mxu0 %v337
        %v453 = vpop.f32.mrf.mxu0
        %v454 = vadd.f32 %v264, %v453
        %455 = vmatmul.f32.gmra.mxu0 %v340
        %v456 = vpop.f32.mrf.mxu0
        %v457 = vadd.f32 %v264, %v456
        %458 = vmatmul.f32.gmra.mxu0 %v343
        %v459 = vpop.f32.mrf.mxu0
        %v460 = vadd.f32 %v264, %v459
        %461 = vmatmul.f32.gmra.mxu0 %v346
        %v462 = vpop.f32.mrf.mxu0
        %v463 = vadd.f32 %v264, %v462
        %464 = vmatmul.f32.gmra.mxu0 %v349
        %v465 = vpop.f32.mrf.mxu0
        %v466 = vadd.f32 %v264, %v465
        %467 = vmatmul.f32.gmra.mxu0 %v352
        %v468 = vpop.f32.mrf.mxu0
        %v469 = vadd.f32 %v264, %v468
        %470 = vmatmul.f32.gmra.mxu0 %v355
        %v471 = vpop.f32.mrf.mxu0
        %v472 = vadd.f32 %v264, %v471
        %473 = vmatmul.f32.gmra.mxu0 %v358
        %v474 = vpop.f32.mrf.mxu0
        %v475 = vadd.f32 %v264, %v474
        %476 = vmatmul.f32.gmra.mxu0 %v361
        %v477 = vpop.f32.mrf.mxu0
        %v478 = vadd.f32 %v264, %v477
        %479 = vdwg.mxu0
        %vm480 = vcmask 64512
        %481 = vst.msk [vmem:[%s223] sm:$0xff] %vm480, %v385
        %482 = vst.msk [vmem:[%s223 + $0x8] sm:$0xff] %vm480, %v388
        %483 = vst.msk [vmem:[%s223 + $0x10] sm:$0xff] %vm480, %v391
        %484 = vst.msk [vmem:[%s223 + $0x18] sm:$0xff] %vm480, %v394
        %485 = vst.msk [vmem:[%s223 + $0x20] sm:$0xff] %vm480, %v397
        %486 = vst.msk [vmem:[%s223 + $0x28] sm:$0xff] %vm480, %v400
        %487 = vst.msk [vmem:[%s223 + $0x30] sm:$0xff] %vm480, %v403
        %488 = vst.msk [vmem:[%s223 + $0x38] sm:$0xff] %vm480, %v406
        %489 = vst.msk [vmem:[%s223 + $0x40] sm:$0xff] %vm480, %v409
        %490 = vst.msk [vmem:[%s223 + $0x48] sm:$0xff] %vm480, %v412
        %491 = vst.msk [vmem:[%s223 + $0x50] sm:$0xff] %vm480, %v415
        %492 = vst.msk [vmem:[%s223 + $0x58] sm:$0xff] %vm480, %v418
        %493 = vst.msk [vmem:[%s223 + $0x60] sm:$0xff] %vm480, %v421
        %494 = vst.msk [vmem:[%s223 + $0x68] sm:$0xff] %vm480, %v424
        %495 = vst.msk [vmem:[%s223 + $0x70] sm:$0xff] %vm480, %v427
        %496 = vst.msk [vmem:[%s223 + $0x78] sm:$0xff] %vm480, %v430
        %497 = vst.msk [vmem:[%s223 + $0x80] sm:$0xff] %vm480, %v433
        %498 = vst.msk [vmem:[%s223 + $0x88] sm:$0xff] %vm480, %v436
        %499 = vst.msk [vmem:[%s223 + $0x90] sm:$0xff] %vm480, %v439
        %500 = vst.msk [vmem:[%s223 + $0x98] sm:$0xff] %vm480, %v442
        %501 = vst.msk [vmem:[%s223 + $0xa0] sm:$0xff] %vm480, %v445
        %502 = vst.msk [vmem:[%s223 + $0xa8] sm:$0xff] %vm480, %v448
        %503 = vst.msk [vmem:[%s223 + $0xb0] sm:$0xff] %vm480, %v451
        %504 = vst.msk [vmem:[%s223 + $0xb8] sm:$0xff] %vm480, %v454
        %505 = vst.msk [vmem:[%s223 + $0xc0] sm:$0xff] %vm480, %v457
        %506 = vst.msk [vmem:[%s223 + $0xc8] sm:$0xff] %vm480, %v460
        %507 = vst.msk [vmem:[%s223 + $0xd0] sm:$0xff] %vm480, %v463
        %508 = vst.msk [vmem:[%s223 + $0xd8] sm:$0xff] %vm480, %v466
        %509 = vst.msk [vmem:[%s223 + $0xe0] sm:$0xff] %vm480, %v469
        %510 = vst.msk [vmem:[%s223 + $0xe8] sm:$0xff] %vm480, %v472
        %511 = vst.msk [vmem:[%s223 + $0xf0] sm:$0xff] %vm480, %v475
        %512 = vst.msk [vmem:[%s223 + $0xf8] sm:$0xff] %vm480, %v478
        %s513 = sadd.s32 %s19, 1
        %s514 = smul.u32 %s513, 256
        %s515 = ssub.s32 %s514, 512
        %p516 = scmp.gt.s32.totalorder %s515, 0
        %s517 = scalar_select %p516, %s515, 0
        %s518 = scvt.s32.f32 %s517
        %v519 = vld [vmem:[%s2] sm:$0x1]
        %v520 = vsel %vm480, %v385, 0.0
        %v521 = vsel %vm480, %v388, 0.0
        %v522 = vadd.f32 %v520, %v521
        %v523 = vsel %vm480, %v391, 0.0
        %v524 = vadd.f32 %v522, %v523
        %v525 = vsel %vm480, %v394, 0.0
        %v526 = vadd.f32 %v524, %v525
        %v527 = vsel %vm480, %v397, 0.0
        %v528 = vadd.f32 %v526, %v527
        %v529 = vsel %vm480, %v400, 0.0
        %v530 = vadd.f32 %v528, %v529
        %v531 = vsel %vm480, %v403, 0.0
        %v532 = vadd.f32 %v530, %v531
        %v533 = vsel %vm480, %v406, 0.0
        %v534 = vadd.f32 %v532, %v533
        %v535 = vsel %vm480, %v409, 0.0
        %v536 = vadd.f32 %v534, %v535
        %v537 = vsel %vm480, %v412, 0.0
        %v538 = vadd.f32 %v536, %v537
        %v539 = vsel %vm480, %v415, 0.0
        %v540 = vadd.f32 %v538, %v539
        %v541 = vsel %vm480, %v418, 0.0
        %v542 = vadd.f32 %v540, %v541
        %v543 = vsel %vm480, %v421, 0.0
        %v544 = vadd.f32 %v542, %v543
        %v545 = vsel %vm480, %v424, 0.0
        %v546 = vadd.f32 %v544, %v545
        %v547 = vsel %vm480, %v427, 0.0
        %v548 = vadd.f32 %v546, %v547
        %v549 = vsel %vm480, %v430, 0.0
        %v550 = vadd.f32 %v548, %v549
        %v551 = vsel %vm480, %v433, 0.0
        %v552 = vadd.f32 %v550, %v551
        %v553 = vsel %vm480, %v436, 0.0
        %v554 = vadd.f32 %v552, %v553
        %v555 = vsel %vm480, %v439, 0.0
        %v556 = vadd.f32 %v554, %v555
        %v557 = vsel %vm480, %v442, 0.0
        %v558 = vadd.f32 %v556, %v557
        %v559 = vsel %vm480, %v445, 0.0
        %v560 = vadd.f32 %v558, %v559
        %v561 = vsel %vm480, %v448, 0.0
        %v562 = vadd.f32 %v560, %v561
        %v563 = vsel %vm480, %v451, 0.0
        %v564 = vadd.f32 %v562, %v563
        %v565 = vsel %vm480, %v454, 0.0
        %v566 = vadd.f32 %v564, %v565
        %v567 = vsel %vm480, %v457, 0.0
        %v568 = vadd.f32 %v566, %v567
        %v569 = vsel %vm480, %v460, 0.0
        %v570 = vadd.f32 %v568, %v569
        %v571 = vsel %vm480, %v463, 0.0
        %v572 = vadd.f32 %v570, %v571
        %v573 = vsel %vm480, %v466, 0.0
        %v574 = vadd.f32 %v572, %v573
        %v575 = vsel %vm480, %v469, 0.0
        %v576 = vadd.f32 %v574, %v575
        %v577 = vsel %vm480, %v472, 0.0
        %v578 = vadd.f32 %v576, %v577
        %v579 = vsel %vm480, %v475, 0.0
        %v580 = vadd.f32 %v578, %v579
        %v581 = vsel %vm480, %v478, 0.0
        %v582 = vadd.f32 %v580, %v581
        %v583 = vrot.slane %v582, 4
        %v584 = vadd.f32 %v582, %v583
        %v585 = vrot.slane %v584, 2
        %v586 = vadd.f32 %v584, %v585
        %v587 = vrot.slane %v586, 1
        %v588 = vadd.f32 %v586, %v587
        %v589 = vstv %s518
        %v590 = vmul.f32 %v589, %v519
        %v591 = vsub.f32 %v588, %v590
        %v592 = vmul.f32 %v385, %v385
        %v593 = vmul.f32 %v388, %v388
        %v594 = vmul.f32 %v391, %v391
        %v595 = vmul.f32 %v394, %v394
        %v596 = vmul.f32 %v397, %v397
        %v597 = vmul.f32 %v400, %v400
        %v598 = vmul.f32 %v403, %v403
        %v599 = vmul.f32 %v406, %v406
        %v600 = vmul.f32 %v409, %v409
        %v601 = vmul.f32 %v412, %v412
        %v602 = vmul.f32 %v415, %v415
        %v603 = vmul.f32 %v418, %v418
        %v604 = vmul.f32 %v421, %v421
        %v605 = vmul.f32 %v424, %v424
        %v606 = vmul.f32 %v427, %v427
        %v607 = vmul.f32 %v430, %v430
        %v608 = vmul.f32 %v433, %v433
        %v609 = vmul.f32 %v436, %v436
        %v610 = vmul.f32 %v439, %v439
        %v611 = vmul.f32 %v442, %v442
        %v612 = vmul.f32 %v445, %v445
        %v613 = vmul.f32 %v448, %v448
        %v614 = vmul.f32 %v451, %v451
        %v615 = vmul.f32 %v454, %v454
        %v616 = vmul.f32 %v457, %v457
        %v617 = vmul.f32 %v460, %v460
        %v618 = vmul.f32 %v463, %v463
        %v619 = vmul.f32 %v466, %v466
        %v620 = vmul.f32 %v469, %v469
        %v621 = vmul.f32 %v472, %v472
        %v622 = vmul.f32 %v475, %v475
        %v623 = vmul.f32 %v478, %v478
        %v624 = vsel %vm480, %v592, 0.0
        %v625 = vsel %vm480, %v593, 0.0
        %v626 = vadd.f32 %v624, %v625
        %v627 = vsel %vm480, %v594, 0.0
        %v628 = vadd.f32 %v626, %v627
        %v629 = vsel %vm480, %v595, 0.0
        %v630 = vadd.f32 %v628, %v629
        %v631 = vsel %vm480, %v596, 0.0
        %v632 = vadd.f32 %v630, %v631
        %v633 = vsel %vm480, %v597, 0.0
        %v634 = vadd.f32 %v632, %v633
        %v635 = vsel %vm480, %v598, 0.0
        %v636 = vadd.f32 %v634, %v635
        %v637 = vsel %vm480, %v599, 0.0
        %v638 = vadd.f32 %v636, %v637
        %v639 = vsel %vm480, %v600, 0.0
        %v640 = vadd.f32 %v638, %v639
        %v641 = vsel %vm480, %v601, 0.0
        %v642 = vadd.f32 %v640, %v641
        %v643 = vsel %vm480, %v602, 0.0
        %v644 = vadd.f32 %v642, %v643
        %v645 = vsel %vm480, %v603, 0.0
        %v646 = vadd.f32 %v644, %v645
        %v647 = vsel %vm480, %v604, 0.0
        %v648 = vadd.f32 %v646, %v647
        %v649 = vsel %vm480, %v605, 0.0
        %v650 = vadd.f32 %v648, %v649
        %v651 = vsel %vm480, %v606, 0.0
        %v652 = vadd.f32 %v650, %v651
        %v653 = vsel %vm480, %v607, 0.0
        %v654 = vadd.f32 %v652, %v653
        %v655 = vsel %vm480, %v608, 0.0
        %v656 = vadd.f32 %v654, %v655
        %v657 = vsel %vm480, %v609, 0.0
        %v658 = vadd.f32 %v656, %v657
        %v659 = vsel %vm480, %v610, 0.0
        %v660 = vadd.f32 %v658, %v659
        %v661 = vsel %vm480, %v611, 0.0
        %v662 = vadd.f32 %v660, %v661
        %v663 = vsel %vm480, %v612, 0.0
        %v664 = vadd.f32 %v662, %v663
        %v665 = vsel %vm480, %v613, 0.0
        %v666 = vadd.f32 %v664, %v665
        %v667 = vsel %vm480, %v614, 0.0
        %v668 = vadd.f32 %v666, %v667
        %v669 = vsel %vm480, %v615, 0.0
        %v670 = vadd.f32 %v668, %v669
        %v671 = vsel %vm480, %v616, 0.0
        %v672 = vadd.f32 %v670, %v671
        %v673 = vsel %vm480, %v617, 0.0
        %v674 = vadd.f32 %v672, %v673
        %v675 = vsel %vm480, %v618, 0.0
        %v676 = vadd.f32 %v674, %v675
        %v677 = vsel %vm480, %v619, 0.0
        %v678 = vadd.f32 %v676, %v677
        %v679 = vsel %vm480, %v620, 0.0
        %v680 = vadd.f32 %v678, %v679
        %v681 = vsel %vm480, %v621, 0.0
        %v682 = vadd.f32 %v680, %v681
        %v683 = vsel %vm480, %v622, 0.0
        %v684 = vadd.f32 %v682, %v683
        %v685 = vsel %vm480, %v623, 0.0
        %v686 = vadd.f32 %v684, %v685
        %v687 = vrot.slane %v686, 4
        %v688 = vadd.f32 %v686, %v687
        %v689 = vrot.slane %v688, 2
        %v690 = vadd.f32 %v688, %v689
        %v691 = vrot.slane %v690, 1
        %v692 = vadd.f32 %v690, %v691
        %v693 = vmul.f32 %v519, %v519
        %v694 = vmul.f32 %v589, %v693
        %v695 = vsub.f32 %v692, %v694
        %p696 = scmp.eq.s32.totalorder %s19, 0
        // Predicated region
        $region33: #{tpu_custom_call.1} parent=31 // pred_check
          %p697 = pneg %p696
        $region34: #{tpu_custom_call.1} parent=31 // pred_check_branch
          %699 = sbr.rel (%p697) target = $region36
        $region35: #{tpu_custom_call.1} parent=31 // pred_region
          %vm700 = vcmask 57344
          %701 = vst.msk [vmem:[#allocation2] sm:$0x1] %vm700, 0.0
          %702 = vst.msk [vmem:[#allocation4] sm:$0x1] %vm700, 0.0
        $region36: #{tpu_custom_call.1} parent=31 // pred_fallthru
          _
        %v703 = vld [vmem:[#allocation2] sm:$0x1]
        %v704 = vadd.f32 %v703, %v591
        %vm705 = vcmask 57344
        %706 = vst.msk [vmem:[#allocation2] sm:$0x1] %vm705, %v704
        %v707 = vld [vmem:[#allocation4] sm:$0x1]
        %v708 = vadd.f32 %v707, %v695
        %709 = vst.msk [vmem:[#allocation4] sm:$0x1] %vm705, %v708
        %s710 = smul.u32 32, %s19
        %p711 = scmp.lt.s32.totalorder %s710, 63
        %s712 = scalar_select %p711, %s710, 63
        %s713 = smul.addr %s712, 8
        %s714 = scalar_lea.vmem %s3, %s713
        // Predicated region
        $region37: #{tpu_custom_call.1} parent=31 // pred_check
          %p715 = pneg %p105
        $region38: #{tpu_custom_call.1} parent=31 // pred_check_branch
          %717 = sbr.rel (%p715) target = $region40
        $region39: #{tpu_custom_call.1} parent=31 // pred_region
          %s718 = smul.u32 32, %s19
        $region40: #{tpu_custom_call.1} parent=31 // pred_fallthru
          _
        // Predicated region
        $region41: #{tpu_custom_call.1} parent=31 // pred_check
          %p719 = pneg %p126
        $region42: #{tpu_custom_call.1} parent=31 // pred_check_branch
          %721 = sbr.rel (%p719) target = $region44
        $region43: #{tpu_custom_call.1} parent=31 // pred_region
          %723 = vsyncadd [#allocation3], 0
          %s725 = sshll.u32 [#allocation2], 4
          %s726 = int_to_ptr.vmem [resolvable:$true] %s725
          %s727 = sshll.u32 %s4, 4
          %s728 = int_to_ptr.hbm [resolvable:$true] %s727
          %730 = dma.vmem_to_hbm [thread:$0]  %s726, 16, %s728, [#allocation3]
        $region44: #{tpu_custom_call.1} parent=31 // pred_fallthru
          _
        // Predicated region
        $region45: #{tpu_custom_call.1} parent=31 // pred_check
          %p731 = pneg %p147
        $region46: #{tpu_custom_call.1} parent=31 // pred_check_branch
          %733 = sbr.rel (%p731) target = $region48
        $region47: #{tpu_custom_call.1} parent=31 // pred_region
          %735 = vsyncadd [#allocation5], 0
          %s737 = sshll.u32 [#allocation4], 4
          %s738 = int_to_ptr.vmem [resolvable:$true] %s737
          %s739 = sshll.u32 %s5, 4
          %s740 = int_to_ptr.hbm [resolvable:$true] %s739
          %742 = dma.vmem_to_hbm [thread:$0]  %s738, 16, %s740, [#allocation5]
        $region48: #{tpu_custom_call.1} parent=31 // pred_fallthru
          _
        // Predicated region
        $region49: #{tpu_custom_call.1} parent=31 // pred_check
          %p743 = pneg %p126
        $region50: #{tpu_custom_call.1} parent=31 // pred_check_branch
          %745 = sbr.rel (%p743) target = $region52
        $region51: #{tpu_custom_call.1} parent=31 // pred_region
          %747 = dma.done [#allocation3], 16
        $region52: #{tpu_custom_call.1} parent=31 // pred_fallthru
          _
        // Predicated region
        $region53: #{tpu_custom_call.1} parent=31 // pred_check
          %p748 = pneg %p147
        $region54: #{tpu_custom_call.1} parent=31 // pred_check_branch
          %750 = sbr.rel (%p748) target = $region56
        $region55: #{tpu_custom_call.1} parent=31 // pred_region
          %752 = dma.done [#allocation5], 16
        $region56: #{tpu_custom_call.1} parent=31 // pred_fallthru
          _
      $region32: #{tpu_custom_call.1} parent=5 // pred_fallthru
        _
      %p753 = scmp.le.s32.totalorder 2, %s14
      // Predicated region
      $region57: #{tpu_custom_call.1} parent=5 // pred_check
        %p754 = pneg %p753
      $region58: #{tpu_custom_call.1} parent=5 // pred_check_branch
        %756 = sbr.rel (%p754) target = $region60
      $region59: #{tpu_custom_call.1} parent=5 // pred_region
        %s757 = ssub.s32 %s14, 2
        // Predicated region
        $region61: #{tpu_custom_call.1} parent=59 // pred_check
          %p758 = pneg %p111
        $region62: #{tpu_custom_call.1} parent=59 // pred_check_branch
          %760 = sbr.rel (%p758) target = $region64
        $region63: #{tpu_custom_call.1} parent=59 // pred_region
          %s761 = smul.u32 32, %s20
          %p762 = scmp.lt.s32.totalorder %s761, 63
          %s763 = scalar_select %p762, %s761, 63
          %s764 = smul.addr %s763, 8
          %s765 = scalar_lea.vmem %s3, %s764
        $region64: #{tpu_custom_call.1} parent=59 // pred_fallthru
          _
      $region60: #{tpu_custom_call.1} parent=5 // pred_fallthru
        _
    $region6: #{tpu_custom_call.1} parent=1 // loop_footer
      %s18 = sadd.s32 1, %s14
    $region7: #{tpu_custom_call.1} parent=1 // loop_footer_branch
      %13 = sbr.rel target = $region3
    $region8: #{tpu_custom_call.1} parent=1 // loop_exit
      _
    %766 = vsyncpa [#allocation3], 1
    %s767 = scalar_lea.sflag [#allocation3], 1
    %768 = vsyncpa %s767, 1
    %769 = vsyncpa [#allocation5], 1

</llo_original>
